<compile_context>
chip_gen: v7x
topology: tpu7x:2x2x1
jax: 0.10.0
libtpu: 0.0.40
codegen_flags: <defaults>
</compile_context>

<pallas_src>
import functools

import jax
import jax.numpy as jnp
from jax.experimental import pallas as pl
from jax.experimental.pallas import tpu as pltpu


def _fused_concat_conv_kernel(x_ref, w_ref, b_ref, o_ref, *, k, w_in, l):
    """One batch element: K*K shifted accumulating dots over the flattened image.

    x_ref: (1, C_in, H*W)     input image, flattened spatial
    w_ref: (K, K, C_out, C_in) conv weights for the real input channels
    b_ref: (C_out, 1)          effective bias (module bias + folded time channel), f32
    o_ref: (1, C_out, L)       output, L = (OH-1)*W + OW (lane-dense spatial axis)
    """
    c_out = o_ref.shape[1]
    acc = jnp.zeros((c_out, l), jnp.float32)
    for kh in range(k):
        for kw in range(k):
            s = kh * w_in + kw
            slab = x_ref[0, :, s:s + l]            # (C_in, L) contiguous VMEM load
            w_kk = w_ref[kh, kw]                   # (C_out, C_in)
            acc = acc + jnp.dot(w_kk, slab, preferred_element_type=jnp.float32)
    o_ref[0] = (acc + b_ref[...]).astype(o_ref.dtype)


def concat_conv2d(t, x, weight, bias, *, stride=1):
    """Forward of ConcatConv2d: conv2d(concat([t*ones, x], channel), weight, bias), padding=0.

    x: (N, C_in, H, W); weight: (C_out, C_in+1, K, K) (PyTorch OIHW); bias: (C_out,) or None.
    t must be a scalar (the time-channel fold is only exact for scalar t and padding=0).
    """
    assert stride == 1, "TODO(synk): stride != 1 not implemented (module default is 1)"
    n, c_in, h, w = x.shape
    c_out, c_in1, k, k2 = weight.shape
    assert k == k2 and c_in1 == c_in + 1
    assert jnp.ndim(t) == 0, "time-channel fold requires a scalar t"
    oh = h - k + 1
    ow = w - k + 1
    l = (oh - 1) * w + ow          # full-row-width output columns handled per step

    if bias is None:
        bias = jnp.zeros((c_out,), jnp.float32)

    # --- Fold the constant time channel into an f32 effective bias (exact, padding=0). ---
    w_t = weight[:, 0, :, :].astype(jnp.float32)              # weights hitting the time plane
    w_x = weight[:, 1:, :, :]                                  # (C_out, C_in, K, K)
    t32 = jnp.asarray(t, jnp.float32)
    b_eff = bias.astype(jnp.float32) + t32 * jnp.sum(w_t, axis=(1, 2))
    b_col = b_eff.reshape(c_out, 1)                            # (C_out, 1) f32

    # --- Operand prep (no data inflation): free contiguous reshape + tiny weight transpose. ---
    xf = x.reshape(n, c_in, h * w)                             # (N, C_in, H*W), native dtype
    w_r = jnp.transpose(w_x, (2, 3, 0, 1)).astype(x.dtype)     # (K, K, C_out, C_in)

    kernel = functools.partial(_fused_concat_conv_kernel, k=k, w_in=w, l=l)

    flops = 2 * n * k * k * c_out * c_in * l
    bytes_accessed = (xf.size * xf.dtype.itemsize
                      + w_r.size * w_r.dtype.itemsize
                      + b_col.size * 4
                      + n * c_out * l * x.dtype.itemsize)

    out_full = pl.pallas_call(
        kernel,
        out_shape=jax.ShapeDtypeStruct((n, c_out, l), x.dtype),
        grid_spec=pltpu.PrefetchScalarGridSpec(
            num_scalar_prefetch=0,
            grid=(n,),
            in_specs=[
                pl.BlockSpec((1, c_in, h * w), lambda i: (i, 0, 0)),       # one image
                pl.BlockSpec((k, k, c_out, c_in), lambda i: (0, 0, 0, 0)),  # full weights
                pl.BlockSpec((c_out, 1), lambda i: (0, 0)),                 # effective bias
            ],
            out_specs=pl.BlockSpec((1, c_out, l), lambda i: (i, 0, 0)),
        ),
        compiler_params=pltpu.CompilerParams(
            dimension_semantics=("parallel",),
        ),
        cost_estimate=pl.CostEstimate(
            flops=flops, transcendentals=0, bytes_accessed=bytes_accessed),
    )(xf, w_r, b_col)

    # Host-side extraction of the valid columns (j < OW); the (K-1) wrapped columns per
    # row are garbage by construction and are discarded here.  Output-sized, cheap.
    out_pad = jnp.pad(out_full, ((0, 0), (0, 0), (0, k - 1)))   # (N, C_out, OH*W)
    out = out_pad.reshape(n, c_out, oh, w)[..., :ow]            # (N, C_out, OH, OW) == NCHW
    return out


if __name__ == "__main__":
    key = jax.random.PRNGKey(0)
    k1, k2, k3 = jax.random.split(key, 3)

    N, C_IN, H, W = 2, 4, 16, 16
    C_OUT, K = 8, 3

    x = jax.random.normal(k1, (N, C_IN, H, W), dtype=jnp.float32)
    weight = jax.random.normal(k2, (C_OUT, C_IN + 1, K, K), dtype=jnp.float32) * 0.1
    bias = jax.random.normal(k3, (C_OUT,), dtype=jnp.float32) * 0.1
    t = jnp.float32(0.5)

    out = concat_conv2d(t, x, weight, bias)
    out = jax.block_until_ready(out)

    # Reference: literal module semantics (concat time channel, then Conv2d, padding=0).
    tt = jnp.ones((N, 1, H, W), x.dtype) * t
    ttx = jnp.concatenate([tt, x], axis=1)
    ref = jax.lax.conv_general_dilated(
        ttx, weight, window_strides=(1, 1), padding="VALID",
        dimension_numbers=("NCHW", "OIHW", "NCHW"),
        precision=jax.lax.Precision.HIGHEST,
    ) + bias.reshape(1, -1, 1, 1)

    assert out.shape == ref.shape, (out.shape, ref.shape)
    max_err = float(jnp.max(jnp.abs(out - ref)))
    assert bool(jnp.allclose(out, ref, atol=2e-2, rtol=2e-2)), max_err

    print("KERNEL_OK")
</pallas_src>

<mosaic_0001>
module attributes {stable_mosaic.version = 11 : i64} {
  func.func @_fused_concat_conv_kernel(%arg0: i32, %arg1: memref<1x4x256xf32, #tpu.memory_space<vmem>>, %arg2: memref<3x3x8x4xf32, #tpu.memory_space<vmem>>, %arg3: memref<8x1xf32, #tpu.memory_space<vmem>>, %arg4: memref<1x8x222xf32, #tpu.memory_space<vmem>>) attributes {dimension_semantics = [#tpu.dimension_semantics<parallel>], iteration_bounds = array<i64: 2>, scalar_prefetch = 0 : i64, scratch_operands = 0 : i64, tpu.core_type = #tpu.core_type<tc>, window_params = [{transform_indices = @transform_0, window_bounds = array<i64: 1, 4, 256>}, {pipeline_mode = #tpu.pipeline_mode<synchronous>, transform_indices = @transform_1, window_bounds = array<i64: 3, 3, 8, 4>}, {pipeline_mode = #tpu.pipeline_mode<synchronous>, transform_indices = @transform_2, window_bounds = array<i64: 8, 1>}, {transform_indices = @transform_3, window_bounds = array<i64: 1, 8, 222>}]} {
    %cst = arith.constant 0.000000e+00 : f32
    %0 = vector.broadcast %cst : f32 to vector<8x222xf32>
    %c0 = arith.constant 0 : index
    %c0_0 = arith.constant 0 : index
    %c0_1 = arith.constant 0 : index
    %1 = vector.load %arg1[%c0, %c0_0, %c0_1] : memref<1x4x256xf32, #tpu.memory_space<vmem>>, vector<1x4x222xf32>
    %2 = vector.shape_cast %1 : vector<1x4x222xf32> to vector<4x222xf32>
    %c0_2 = arith.constant 0 : index
    %c0_3 = arith.constant 0 : index
    %c0_4 = arith.constant 0 : index
    %c0_5 = arith.constant 0 : index
    %3 = vector.load %arg2[%c0_2, %c0_3, %c0_4, %c0_5] : memref<3x3x8x4xf32, #tpu.memory_space<vmem>>, vector<1x1x8x4xf32>
    %4 = vector.shape_cast %3 : vector<1x1x8x4xf32> to vector<8x4xf32>
    %cst_6 = arith.constant dense<0.000000e+00> : vector<8x222xf32>
    %5 = tpu.matmul %4, %2, %cst_6 {dimension_numbers = #tpu.dot_dimension_numbers<[1], [0], [0], [1], [0, 0, 1, 1], [], []>} : vector<8x4xf32>, vector<4x222xf32>, vector<8x222xf32> -> vector<8x222xf32>
    %6 = arith.addf %0, %5 : vector<8x222xf32>
    %c0_7 = arith.constant 0 : index
    %c0_8 = arith.constant 0 : index
    %c1 = arith.constant 1 : index
    %7 = vector.load %arg1[%c0_7, %c0_8, %c1] : memref<1x4x256xf32, #tpu.memory_space<vmem>>, vector<1x4x222xf32>
    %8 = vector.shape_cast %7 : vector<1x4x222xf32> to vector<4x222xf32>
    %c0_9 = arith.constant 0 : index
    %c1_10 = arith.constant 1 : index
    %c0_11 = arith.constant 0 : index
    %c0_12 = arith.constant 0 : index
    %9 = vector.load %arg2[%c0_9, %c1_10, %c0_11, %c0_12] : memref<3x3x8x4xf32, #tpu.memory_space<vmem>>, vector<1x1x8x4xf32>
    %10 = vector.shape_cast %9 : vector<1x1x8x4xf32> to vector<8x4xf32>
    %cst_13 = arith.constant dense<0.000000e+00> : vector<8x222xf32>
    %11 = tpu.matmul %10, %8, %cst_13 {dimension_numbers = #tpu.dot_dimension_numbers<[1], [0], [0], [1], [0, 0, 1, 1], [], []>} : vector<8x4xf32>, vector<4x222xf32>, vector<8x222xf32> -> vector<8x222xf32>
    %12 = arith.addf %6, %11 : vector<8x222xf32>
    %c0_14 = arith.constant 0 : index
    %c0_15 = arith.constant 0 : index
    %c2 = arith.constant 2 : index
    %13 = vector.load %arg1[%c0_14, %c0_15, %c2] : memref<1x4x256xf32, #tpu.memory_space<vmem>>, vector<1x4x222xf32>
    %14 = vector.shape_cast %13 : vector<1x4x222xf32> to vector<4x222xf32>
    %c0_16 = arith.constant 0 : index
    %c2_17 = arith.constant 2 : index
    %c0_18 = arith.constant 0 : index
    %c0_19 = arith.constant 0 : index
    %15 = vector.load %arg2[%c0_16, %c2_17, %c0_18, %c0_19] : memref<3x3x8x4xf32, #tpu.memory_space<vmem>>, vector<1x1x8x4xf32>
    %16 = vector.shape_cast %15 : vector<1x1x8x4xf32> to vector<8x4xf32>
    %cst_20 = arith.constant dense<0.000000e+00> : vector<8x222xf32>
    %17 = tpu.matmul %16, %14, %cst_20 {dimension_numbers = #tpu.dot_dimension_numbers<[1], [0], [0], [1], [0, 0, 1, 1], [], []>} : vector<8x4xf32>, vector<4x222xf32>, vector<8x222xf32> -> vector<8x222xf32>
    %18 = arith.addf %12, %17 : vector<8x222xf32>
    %c0_21 = arith.constant 0 : index
    %c0_22 = arith.constant 0 : index
    %c16 = arith.constant 16 : index
    %19 = vector.load %arg1[%c0_21, %c0_22, %c16] : memref<1x4x256xf32, #tpu.memory_space<vmem>>, vector<1x4x222xf32>
    %20 = vector.shape_cast %19 : vector<1x4x222xf32> to vector<4x222xf32>
    %c1_23 = arith.constant 1 : index
    %c0_24 = arith.constant 0 : index
    %c0_25 = arith.constant 0 : index
    %c0_26 = arith.constant 0 : index
    %21 = vector.load %arg2[%c1_23, %c0_24, %c0_25, %c0_26] : memref<3x3x8x4xf32, #tpu.memory_space<vmem>>, vector<1x1x8x4xf32>
    %22 = vector.shape_cast %21 : vector<1x1x8x4xf32> to vector<8x4xf32>
    %cst_27 = arith.constant dense<0.000000e+00> : vector<8x222xf32>
    %23 = tpu.matmul %22, %20, %cst_27 {dimension_numbers = #tpu.dot_dimension_numbers<[1], [0], [0], [1], [0, 0, 1, 1], [], []>} : vector<8x4xf32>, vector<4x222xf32>, vector<8x222xf32> -> vector<8x222xf32>
    %24 = arith.addf %18, %23 : vector<8x222xf32>
    %c0_28 = arith.constant 0 : index
    %c0_29 = arith.constant 0 : index
    %c17 = arith.constant 17 : index
    %25 = vector.load %arg1[%c0_28, %c0_29, %c17] : memref<1x4x256xf32, #tpu.memory_space<vmem>>, vector<1x4x222xf32>
    %26 = vector.shape_cast %25 : vector<1x4x222xf32> to vector<4x222xf32>
    %c1_30 = arith.constant 1 : index
    %c1_31 = arith.constant 1 : index
    %c0_32 = arith.constant 0 : index
    %c0_33 = arith.constant 0 : index
    %27 = vector.load %arg2[%c1_30, %c1_31, %c0_32, %c0_33] : memref<3x3x8x4xf32, #tpu.memory_space<vmem>>, vector<1x1x8x4xf32>
    %28 = vector.shape_cast %27 : vector<1x1x8x4xf32> to vector<8x4xf32>
    %cst_34 = arith.constant dense<0.000000e+00> : vector<8x222xf32>
    %29 = tpu.matmul %28, %26, %cst_34 {dimension_numbers = #tpu.dot_dimension_numbers<[1], [0], [0], [1], [0, 0, 1, 1], [], []>} : vector<8x4xf32>, vector<4x222xf32>, vector<8x222xf32> -> vector<8x222xf32>
    %30 = arith.addf %24, %29 : vector<8x222xf32>
    %c0_35 = arith.constant 0 : index
    %c0_36 = arith.constant 0 : index
    %c18 = arith.constant 18 : index
    %31 = vector.load %arg1[%c0_35, %c0_36, %c18] : memref<1x4x256xf32, #tpu.memory_space<vmem>>, vector<1x4x222xf32>
    %32 = vector.shape_cast %31 : vector<1x4x222xf32> to vector<4x222xf32>
    %c1_37 = arith.constant 1 : index
    %c2_38 = arith.constant 2 : index
    %c0_39 = arith.constant 0 : index
    %c0_40 = arith.constant 0 : index
    %33 = vector.load %arg2[%c1_37, %c2_38, %c0_39, %c0_40] : memref<3x3x8x4xf32, #tpu.memory_space<vmem>>, vector<1x1x8x4xf32>
    %34 = vector.shape_cast %33 : vector<1x1x8x4xf32> to vector<8x4xf32>
    %cst_41 = arith.constant dense<0.000000e+00> : vector<8x222xf32>
    %35 = tpu.matmul %34, %32, %cst_41 {dimension_numbers = #tpu.dot_dimension_numbers<[1], [0], [0], [1], [0, 0, 1, 1], [], []>} : vector<8x4xf32>, vector<4x222xf32>, vector<8x222xf32> -> vector<8x222xf32>
    %36 = arith.addf %30, %35 : vector<8x222xf32>
    %c0_42 = arith.constant 0 : index
    %c0_43 = arith.constant 0 : index
    %c32 = arith.constant 32 : index
    %37 = vector.load %arg1[%c0_42, %c0_43, %c32] : memref<1x4x256xf32, #tpu.memory_space<vmem>>, vector<1x4x222xf32>
    %38 = vector.shape_cast %37 : vector<1x4x222xf32> to vector<4x222xf32>
    %c2_44 = arith.constant 2 : index
    %c0_45 = arith.constant 0 : index
    %c0_46 = arith.constant 0 : index
    %c0_47 = arith.constant 0 : index
    %39 = vector.load %arg2[%c2_44, %c0_45, %c0_46, %c0_47] : memref<3x3x8x4xf32, #tpu.memory_space<vmem>>, vector<1x1x8x4xf32>
    %40 = vector.shape_cast %39 : vector<1x1x8x4xf32> to vector<8x4xf32>
    %cst_48 = arith.constant dense<0.000000e+00> : vector<8x222xf32>
    %41 = tpu.matmul %40, %38, %cst_48 {dimension_numbers = #tpu.dot_dimension_numbers<[1], [0], [0], [1], [0, 0, 1, 1], [], []>} : vector<8x4xf32>, vector<4x222xf32>, vector<8x222xf32> -> vector<8x222xf32>
    %42 = arith.addf %36, %41 : vector<8x222xf32>
    %c0_49 = arith.constant 0 : index
    %c0_50 = arith.constant 0 : index
    %c33 = arith.constant 33 : index
    %43 = vector.load %arg1[%c0_49, %c0_50, %c33] : memref<1x4x256xf32, #tpu.memory_space<vmem>>, vector<1x4x222xf32>
    %44 = vector.shape_cast %43 : vector<1x4x222xf32> to vector<4x222xf32>
    %c2_51 = arith.constant 2 : index
    %c1_52 = arith.constant 1 : index
    %c0_53 = arith.constant 0 : index
    %c0_54 = arith.constant 0 : index
    %45 = vector.load %arg2[%c2_51, %c1_52, %c0_53, %c0_54] : memref<3x3x8x4xf32, #tpu.memory_space<vmem>>, vector<1x1x8x4xf32>
    %46 = vector.shape_cast %45 : vector<1x1x8x4xf32> to vector<8x4xf32>
    %cst_55 = arith.constant dense<0.000000e+00> : vector<8x222xf32>
    %47 = tpu.matmul %46, %44, %cst_55 {dimension_numbers = #tpu.dot_dimension_numbers<[1], [0], [0], [1], [0, 0, 1, 1], [], []>} : vector<8x4xf32>, vector<4x222xf32>, vector<8x222xf32> -> vector<8x222xf32>
    %48 = arith.addf %42, %47 : vector<8x222xf32>
    %c0_56 = arith.constant 0 : index
    %c0_57 = arith.constant 0 : index
    %c34 = arith.constant 34 : index
    %49 = vector.load %arg1[%c0_56, %c0_57, %c34] : memref<1x4x256xf32, #tpu.memory_space<vmem>>, vector<1x4x222xf32>
    %50 = vector.shape_cast %49 : vector<1x4x222xf32> to vector<4x222xf32>
    %c2_58 = arith.constant 2 : index
    %c2_59 = arith.constant 2 : index
    %c0_60 = arith.constant 0 : index
    %c0_61 = arith.constant 0 : index
    %51 = vector.load %arg2[%c2_58, %c2_59, %c0_60, %c0_61] : memref<3x3x8x4xf32, #tpu.memory_space<vmem>>, vector<1x1x8x4xf32>
    %52 = vector.shape_cast %51 : vector<1x1x8x4xf32> to vector<8x4xf32>
    %cst_62 = arith.constant dense<0.000000e+00> : vector<8x222xf32>
    %53 = tpu.matmul %52, %50, %cst_62 {dimension_numbers = #tpu.dot_dimension_numbers<[1], [0], [0], [1], [0, 0, 1, 1], [], []>} : vector<8x4xf32>, vector<4x222xf32>, vector<8x222xf32> -> vector<8x222xf32>
    %54 = arith.addf %48, %53 : vector<8x222xf32>
    %c0_63 = arith.constant 0 : index
    %c0_64 = arith.constant 0 : index
    %55 = vector.load %arg3[%c0_63, %c0_64] : memref<8x1xf32, #tpu.memory_space<vmem>>, vector<8x1xf32>
    %56 = vector.broadcast %55 : vector<8x1xf32> to vector<8x222xf32>
    %57 = arith.addf %54, %56 : vector<8x222xf32>
    %c0_65 = arith.constant 0 : index
    %c0_66 = arith.constant 0 : index
    %c0_67 = arith.constant 0 : index
    %58 = vector.load %arg4[%c0_65, %c0_66, %c0_67] : memref<1x8x222xf32, #tpu.memory_space<vmem>>, vector<1x8x222xf32>
    %59 = vector.shape_cast %58 : vector<1x8x222xf32> to vector<8x222xf32>
    %60 = vector.shape_cast %57 : vector<8x222xf32> to vector<1x8x222xf32>
    tpu.vector_store %arg4[%c0_65, %c0_66, %c0_67], %60 {strides = array<i32>} : memref<1x8x222xf32, #tpu.memory_space<vmem>>, vector<1x8x222xf32>,
    return
  }
  func.func @transform_0(%arg0: i32) -> (i32, i32, i32) {
    %c0_i32 = arith.constant 0 : i32
    %c0_i32_0 = arith.constant 0 : i32
    %c0_i32_1 = arith.constant 0 : i32
    return %arg0, %c0_i32, %c0_i32_0 : i32, i32, i32
  }
  func.func @transform_1(%arg0: i32) -> (i32, i32, i32, i32) {
    %c0_i32 = arith.constant 0 : i32
    %c0_i32_0 = arith.constant 0 : i32
    %c0_i32_1 = arith.constant 0 : i32
    %c0_i32_2 = arith.constant 0 : i32
    %c0_i32_3 = arith.constant 0 : i32
    return %c0_i32, %c0_i32_0, %c0_i32_1, %c0_i32_2 : i32, i32, i32, i32
  }
  func.func @transform_2(%arg0: i32) -> (i32, i32) {
    %c0_i32 = arith.constant 0 : i32
    %c0_i32_0 = arith.constant 0 : i32
    %c0_i32_1 = arith.constant 0 : i32
    return %c0_i32, %c0_i32_0 : i32, i32
  }
  func.func @transform_3(%arg0: i32) -> (i32, i32, i32) {
    %c0_i32 = arith.constant 0 : i32
    %c0_i32_0 = arith.constant 0 : i32
    %c0_i32_1 = arith.constant 0 : i32
    return %arg0, %c0_i32, %c0_i32_0 : i32, i32, i32
  }
}

</mosaic_0001>

<llo_original>
// kernel: tpu_custom_call.1
$region0: #{tpu_custom_call.1}
  #allocation0 [shape = 'u32[]', space=smem, size = 0x4, offset = 0x4, fixed_abs, tag = 'smem constant byte address 0x4 - core index']
  #allocation1 [shape = 'u32[144,128]{1,0:T(1,128)}', space=vmem, size = 0x12000, scoped, tag = 'internal scratch']
  %s0 = inlined_call_operand.vmem [shape: f32[2,4,256], index: 0, kind: input, shape index: {}]
  %s1 = inlined_call_operand.vmem [shape: f32[3,3,8,4], index: 1, kind: input, shape index: {}]
  %s2 = inlined_call_operand.vmem [shape: f32[8,1], index: 2, kind: input, shape index: {}]
  %s3 = inlined_call_operand.hbm [shape: f32[2,8,222], index: 3, kind: output, shape index: {}]
  %s4 = sld [smem:[#allocation0]]
  $region45: #{tpu_custom_call.1} parent=0
    _
  %s6 = ssub.s32 1, %s4
  %s7 = scalar_select 0, %s6, %s4
  $region1: #{tpu_custom_call.1} parent=0
    #allocation2 [shape = 'u8[16384]{0}', space=vmem, size = 0x4000, scoped, tag = 'output window, operand 0']
    #allocation3 [shape = 's32[2]{0}', space=sflag, size = 0x8, scoped, tag = 'scoped memory for tpu_custom_call.1']
    %8 = vsyncpa [#allocation3], 0
    %s9 = scalar_lea.sflag [#allocation3], 1
    %10 = vsyncpa %s9, 0
    loop: start=0, step=1, limit=4
    $region2: #{tpu_custom_call.1} parent=1 // loop_pre_header
      _
    $region3: #{tpu_custom_call.1} parent=1 // loop_header
      %s12 = sphi 0, %s16
      %p13 = scmp.ge.s32.totalorder %s12, 4
      %s22 = sphi 0, %s24
      %s25 = sphi 0, %s22
      %s26 = sphi 0, %s25
      %s42 = sphi 0, %s26
      %s46 = sphi 0, %s46
      %s48 = sphi 0, %s46
      %s49 = sphi 0, %s48
      %s63 = sphi 0, %s49
      %s67 = sphi 0, %s67
      %s69 = sphi 0, %s67
      %s70 = sphi 0, %s69
      %s84 = sphi 0, %s70
      %s90 = sphi 0, %s92
      %s93 = sphi 0, %s90
      %s94 = sphi 0, %s93
      %s110 = sphi 0, %s94
    $region4: #{tpu_custom_call.1} parent=1 // loop_header_branch
      %15 = sbr.rel (%p13) target = $region8
    $region5: #{tpu_custom_call.1} parent=1 // loop_body
      %s17 = ssub.s32 %s12, 1
      %s18 = ssub.s32 %s12, 2
      %s19 = sadd.s32 %s12, 1
      %s20 = ssub.s32 %s12, %s19
      %p21 = scmp.eq.s32.totalorder %s20, 0
      %s23 = sadd.s32 %s22, 1
      %s24 = scalar_select %p21, %s22, %s23
      %p27 = pneg %p21
      %p28 = scmp.eq.s32.totalorder %s12, 1
      %p29 = por %p27, %p28
      %p30 = scmp.ne.s32.totalorder %s22, %s25
      %p31 = scmp.eq.s32.totalorder %s12, 0
      %p32 = por %p30, %p31
      %p33 = scmp.ne.s32.totalorder %s22, %s25
      %p34 = scmp.eq.s32.totalorder %s17, 1
      %p35 = por %p33, %p34
      %p36 = scmp.ne.s32.totalorder %s25, %s26
      %p37 = scmp.eq.s32.totalorder %s17, 0
      %p38 = por %p36, %p37
      %p39 = scmp.ne.s32.totalorder %s25, %s26
      %p40 = scmp.eq.s32.totalorder %s18, 1
      %p41 = por %p39, %p40
      %p43 = scmp.ne.s32.totalorder %s26, %s42
      %p44 = scmp.eq.s32.totalorder %s18, 0
      %p45 = por %p43, %p44
      %s47 = sadd.s32 %s46, 1
      %p50 = scmp.eq.s32.totalorder %s12, 1
      %p51 = scmp.ne.s32.totalorder %s46, %s48
      %p52 = scmp.eq.s32.totalorder %s12, 0
      %p53 = por %p51, %p52
      %p54 = scmp.ne.s32.totalorder %s46, %s48
      %p55 = scmp.eq.s32.totalorder %s17, 1
      %p56 = por %p54, %p55
      %p57 = scmp.ne.s32.totalorder %s48, %s49
      %p58 = scmp.eq.s32.totalorder %s17, 0
      %p59 = por %p57, %p58
      %p60 = scmp.ne.s32.totalorder %s48, %s49
      %p61 = scmp.eq.s32.totalorder %s18, 1
      %p62 = por %p60, %p61
      %p64 = scmp.ne.s32.totalorder %s49, %s63
      %p65 = scmp.eq.s32.totalorder %s18, 0
      %p66 = por %p64, %p65
      %s68 = sadd.s32 %s67, 1
      %p71 = scmp.eq.s32.totalorder %s12, 1
      %p72 = scmp.ne.s32.totalorder %s67, %s69
      %p73 = scmp.eq.s32.totalorder %s12, 0
      %p74 = por %p72, %p73
      %p75 = scmp.ne.s32.totalorder %s67, %s69
      %p76 = scmp.eq.s32.totalorder %s17, 1
      %p77 = por %p75, %p76
      %p78 = scmp.ne.s32.totalorder %s69, %s70
      %p79 = scmp.eq.s32.totalorder %s17, 0
      %p80 = por %p78, %p79
      %p81 = scmp.ne.s32.totalorder %s69, %s70
      %p82 = scmp.eq.s32.totalorder %s18, 1
      %p83 = por %p81, %p82
      %p85 = scmp.ne.s32.totalorder %s70, %s84
      %p86 = scmp.eq.s32.totalorder %s18, 0
      %p87 = por %p85, %p86
      %s88 = ssub.s32 %s12, %s19
      %p89 = scmp.eq.s32.totalorder %s88, 0
      %s91 = sadd.s32 %s90, 1
      %s92 = scalar_select %p89, %s90, %s91
      %p95 = pneg %p89
      %p96 = scmp.eq.s32.totalorder %s12, 1
      %p97 = por %p95, %p96
      %p98 = scmp.ne.s32.totalorder %s90, %s93
      %p99 = scmp.eq.s32.totalorder %s12, 0
      %p100 = por %p98, %p99
      %p101 = scmp.ne.s32.totalorder %s90, %s93
      %p102 = scmp.eq.s32.totalorder %s17, 1
      %p103 = por %p101, %p102
      %p104 = scmp.ne.s32.totalorder %s93, %s94
      %p105 = scmp.eq.s32.totalorder %s17, 0
      %p106 = por %p104, %p105
      %p107 = scmp.ne.s32.totalorder %s93, %s94
      %p108 = scmp.eq.s32.totalorder %s18, 1
      %p109 = por %p107, %p108
      %p111 = scmp.ne.s32.totalorder %s94, %s110
      %p112 = scmp.eq.s32.totalorder %s18, 0
      %p113 = por %p111, %p112
      %p114 = scmp.le.s32.totalorder 1, %s12
      %p115 = scmp.lt.s32.totalorder %s12, 3
      %p116 = pnand %p114, %p115
      %p117 = pneg %p116
      // Predicated region
      $region9: #{tpu_custom_call.1} parent=5 // pred_check
        _
      $region10: #{tpu_custom_call.1} parent=5 // pred_check_branch
        %119 = sbr.rel (%p116) target = $region12
      $region11: #{tpu_custom_call.1} parent=5 // pred_region
        %s120 = ssub.s32 %s12, 1
        // Predicated region
        $region13: #{tpu_custom_call.1} parent=11 // pred_check
          %p121 = pneg %p59
        $region14: #{tpu_custom_call.1} parent=11 // pred_check_branch
          %123 = sbr.rel (%p121) target = $region16
        $region15: #{tpu_custom_call.1} parent=11 // pred_region
          _
        $region16: #{tpu_custom_call.1} parent=11 // pred_fallthru
          _
        // Predicated region
        $region17: #{tpu_custom_call.1} parent=11 // pred_check
          %p124 = pneg %p80
        $region18: #{tpu_custom_call.1} parent=11 // pred_check_branch
          %126 = sbr.rel (%p124) target = $region20
        $region19: #{tpu_custom_call.1} parent=11 // pred_region
          _
        $region20: #{tpu_custom_call.1} parent=11 // pred_fallthru
          _
      $region12: #{tpu_custom_call.1} parent=5 // pred_fallthru
        _
      %p127 = scmp.lt.s32.totalorder %s12, 2
      // Predicated region
      $region21: #{tpu_custom_call.1} parent=5 // pred_check
        %p128 = pneg %p127
      $region22: #{tpu_custom_call.1} parent=5 // pred_check_branch
        %130 = sbr.rel (%p128) target = $region24
      $region23: #{tpu_custom_call.1} parent=5 // pred_region
        // Predicated region
        $region25: #{tpu_custom_call.1} parent=23 // pred_check
          %p131 = pneg %p32
        $region26: #{tpu_custom_call.1} parent=23 // pred_check_branch
          %133 = sbr.rel (%p131) target = $region28
        $region27: #{tpu_custom_call.1} parent=23 // pred_region
          %p134 = scmp.lt.s32.totalorder %s12, 1
          %s135 = scalar_select %p134, %s12, 1
          %s136 = smul.addr %s135, 2
          %s137 = smul.addr %s136, 4
          %s138 = scalar_lea.vmem %s0, %s137
        $region28: #{tpu_custom_call.1} parent=23 // pred_fallthru
          _
      $region24: #{tpu_custom_call.1} parent=5 // pred_fallthru
        _
      %p139 = scmp.le.s32.totalorder 1, %s12
      %p140 = scmp.lt.s32.totalorder %s12, 3
      %p141 = pnand %p139, %p140
      %p142 = pneg %p141
      // Predicated region
      $region29: #{tpu_custom_call.1} parent=5 // pred_check
        _
      $region30: #{tpu_custom_call.1} parent=5 // pred_check_branch
        %144 = sbr.rel (%p141) target = $region32
      $region31: #{tpu_custom_call.1} parent=5 // pred_region
        %s145 = ssub.s32 %s12, 1
        %p146 = scmp.lt.s32.totalorder %s17, 1
        %s147 = scalar_select %p146, %s17, 1
        %s148 = smul.addr %s147, 2
        %s149 = smul.addr %s148, 4
        %s150 = scalar_lea.vmem %s0, %s149
        %p151 = pneg %p38
        %p152 = pneg %p35
        %p153 = pneg %p59
        %p154 = pneg %p56
        %p155 = pneg %p80
        %p156 = pneg %p77
        %p157 = pneg %p106
        %p158 = pneg %p103
        %s159 = sand.u32 %s93, 1
        %s160 = scalar_lea.sflag [#allocation3], %s159
        %s161 = sand.u32 %s93, 1
        %s162 = smul.addr %s161, 16
        %s163 = scalar_lea.vmem [#allocation2], %s162
        %p164 = scmp.lt.s32.totalorder %s17, 1
        %s165 = scalar_select %p164, %s17, 1
        %s166 = smul.addr %s165, 2
        %s167 = smul.addr %s166, 4
        %s168 = scalar_lea.vmem %s0, %s167
        %v169 = vld [vmem:[%s168] sm:$0xff]
        %v170 = vld [vmem:[%s1] sm:$0xff]
        %s171 = scalar_lea.vmem %s1, 8
        %v172 = vld [vmem:[%s171] sm:$0xff]
        %v174 = vcombine.high %v169, %v169
        %175 = vrot.lane.b32.xlu0 %v169, 127
        %v176 = vpop.permute.xlu0 %175
        %177 = vrot.lane.b32.xlu0 %v174, 127
        %v178 = vpop.permute.xlu0 %177
        %vm179 = vcmask 1039360
        %v180 = vsel %vm179, %v176, %v178
        %vm181 = vcmask 31744
        %v183 = vsel %vm181, %v172, 0
        %vm185 = vcmask 1043456
        %v186 = vsel %vm185, %v180, 0
        %v188 = vsel %vm185, %v178, 0
        %190 = vmatprep.subr.mxu0 %v188
        %191 = vmatpush1.msra.mxu0 %v186
        %192 = vmatprep.subr.mxu0 0.0
        %193 = vmatpush1.msra.mxu0 0.0
        %194 = vmatprep.subr.mxu0 0.0
        %195 = vmatpush1.msra.mxu0 0.0
        %196 = vmatprep.subr.mxu0 0.0
        %197 = vmatpush1.msra.mxu0 0.0
        %198 = vmatprep.subr.mxu0 0.0
        %199 = vmatpush1.msra.mxu0 0.0
        %200 = vmatprep.subr.mxu0 0.0
        %201 = vmatpush1.msra.mxu0 0.0
        %202 = vmatprep.subr.mxu0 0.0
        %203 = vmatpush1.msra.mxu0 0.0
        %204 = vmatprep.subr.mxu0 0.0
        %205 = vmatpush1.msra.mxu0 0.0
        %206 = vmatprep.subr.mxu0 0.0
        %207 = vmatpush1.msra.mxu0 0.0
        %208 = vmatprep.subr.mxu0 0.0
        %209 = vmatpush1.msra.mxu0 0.0
        %210 = vmatprep.subr.mxu0 0.0
        %211 = vmatpush1.msra.mxu0 0.0
        %212 = vmatprep.subr.mxu0 0.0
        %213 = vmatpush1.msra.mxu0 0.0
        %214 = vmatprep.subr.mxu0 0.0
        %215 = vmatpush1.msra.mxu0 0.0
        %216 = vmatprep.subr.mxu0 0.0
        %217 = vmatpush1.msra.mxu0 0.0
        %218 = vmatprep.subr.mxu0 0.0
        %219 = vmatpush1.msra.mxu0 0.0
        %220 = vmatprep.subr.mxu0 0.0
        %221 = vmatpush1.msra.mxu0 0.0
        %222 = vmatprep.subr.mxu0 0.0
        %223 = vmatpush1.msra.mxu0 0.0
        %224 = vmatprep.subr.mxu0 0.0
        %225 = vmatpush1.msra.mxu0 0.0
        %226 = vmatprep.subr.mxu0 0.0
        %227 = vmatpush1.msra.mxu0 0.0
        %228 = vmatprep.subr.mxu0 0.0
        %229 = vmatpush1.msra.mxu0 0.0
        %230 = vmatprep.subr.mxu0 0.0
        %231 = vmatpush1.msra.mxu0 0.0
        %232 = vmatprep.subr.mxu0 0.0
        %233 = vmatpush1.msra.mxu0 0.0
        %234 = vmatprep.subr.mxu0 0.0
        %235 = vmatpush1.msra.mxu0 0.0
        %236 = vmatprep.subr.mxu0 0.0
        %237 = vmatpush1.msra.mxu0 0.0
        %238 = vmatprep.subr.mxu0 0.0
        %239 = vmatpush1.msra.mxu0 0.0
        %240 = vmatprep.subr.mxu0 0.0
        %241 = vmatpush1.msra.mxu0 0.0
        %242 = vmatprep.subr.mxu0 0.0
        %243 = vmatpush1.msra.mxu0 0.0
        %244 = vmatprep.subr.mxu0 0.0
        %245 = vmatpush1.msra.mxu0 0.0
        %246 = vmatprep.subr.mxu0 0.0
        %247 = vmatpush1.msra.mxu0 0.0
        %248 = vmatprep.subr.mxu0 0.0
        %249 = vmatpush1.msra.mxu0 0.0
        %250 = vmatprep.subr.mxu0 0.0
        %251 = vmatpush1.msra.mxu0 0.0
        %252 = vmatprep.subr.mxu0 0.0
        %253 = vmatpush1.msra.mxu0 0.0
        %254 = vmatprep.mubr.f32.mxu0 0.0
        %255 = vmatmul.mubr.f32.gmra.mrb[0].mxu0 %v183
        %v256 = vpop.f32.mrb[0].mxu0
        %v257 = vadd.f32 0.0, %v256
        %v258 = vpop.f32.mrb[0].mxu0
        %v259 = vadd.f32 0.0, %v258
        %260 = vdwg.mxu0
        %v262 = vsel %vm181, %v170, 0
        %v264 = vsel %vm185, %v169, 0
        %v266 = vsel %vm185, %v174, 0
        %268 = vmatprep.subr.mxu0 %v266
        %269 = vmatpush1.msra.mxu0 %v264
        %270 = vmatprep.subr.mxu0 0.0
        %271 = vmatpush1.msra.mxu0 0.0
        %272 = vmatprep.subr.mxu0 0.0
        %273 = vmatpush1.msra.mxu0 0.0
        %274 = vmatprep.subr.mxu0 0.0
        %275 = vmatpush1.msra.mxu0 0.0
        %276 = vmatprep.subr.mxu0 0.0
        %277 = vmatpush1.msra.mxu0 0.0
        %278 = vmatprep.subr.mxu0 0.0
        %279 = vmatpush1.msra.mxu0 0.0
        %280 = vmatprep.subr.mxu0 0.0
        %281 = vmatpush1.msra.mxu0 0.0
        %282 = vmatprep.subr.mxu0 0.0
        %283 = vmatpush1.msra.mxu0 0.0
        %284 = vmatprep.subr.mxu0 0.0
        %285 = vmatpush1.msra.mxu0 0.0
        %286 = vmatprep.subr.mxu0 0.0
        %287 = vmatpush1.msra.mxu0 0.0
        %288 = vmatprep.subr.mxu0 0.0
        %289 = vmatpush1.msra.mxu0 0.0
        %290 = vmatprep.subr.mxu0 0.0
        %291 = vmatpush1.msra.mxu0 0.0
        %292 = vmatprep.subr.mxu0 0.0
        %293 = vmatpush1.msra.mxu0 0.0
        %294 = vmatprep.subr.mxu0 0.0
        %295 = vmatpush1.msra.mxu0 0.0
        %296 = vmatprep.subr.mxu0 0.0
        %297 = vmatpush1.msra.mxu0 0.0
        %298 = vmatprep.subr.mxu0 0.0
        %299 = vmatpush1.msra.mxu0 0.0
        %300 = vmatprep.subr.mxu0 0.0
        %301 = vmatpush1.msra.mxu0 0.0
        %302 = vmatprep.subr.mxu0 0.0
        %303 = vmatpush1.msra.mxu0 0.0
        %304 = vmatprep.subr.mxu0 0.0
        %305 = vmatpush1.msra.mxu0 0.0
        %306 = vmatprep.subr.mxu0 0.0
        %307 = vmatpush1.msra.mxu0 0.0
        %308 = vmatprep.subr.mxu0 0.0
        %309 = vmatpush1.msra.mxu0 0.0
        %310 = vmatprep.subr.mxu0 0.0
        %311 = vmatpush1.msra.mxu0 0.0
        %312 = vmatprep.subr.mxu0 0.0
        %313 = vmatpush1.msra.mxu0 0.0
        %314 = vmatprep.subr.mxu0 0.0
        %315 = vmatpush1.msra.mxu0 0.0
        %316 = vmatprep.subr.mxu0 0.0
        %317 = vmatpush1.msra.mxu0 0.0
        %318 = vmatprep.subr.mxu0 0.0
        %319 = vmatpush1.msra.mxu0 0.0
        %320 = vmatprep.subr.mxu0 0.0
        %321 = vmatpush1.msra.mxu0 0.0
        %322 = vmatprep.subr.mxu0 0.0
        %323 = vmatpush1.msra.mxu0 0.0
        %324 = vmatprep.subr.mxu0 0.0
        %325 = vmatpush1.msra.mxu0 0.0
        %326 = vmatprep.subr.mxu0 0.0
        %327 = vmatpush1.msra.mxu0 0.0
        %328 = vmatprep.subr.mxu0 0.0
        %329 = vmatpush1.msra.mxu0 0.0
        %330 = vmatprep.subr.mxu0 0.0
        %331 = vmatpush1.msra.mxu0 0.0
        %332 = vmatprep.mubr.f32.mxu0 0.0
        %333 = vmatmul.mubr.f32.gmra.mrb[0].mxu0 %v262
        %v334 = vpop.f32.mrb[0].mxu0
        %v335 = vadd.f32 %v257, %v334
        %v336 = vpop.f32.mrb[0].mxu0
        %v337 = vadd.f32 %v259, %v336
        %338 = vdwg.mxu0
        %v339 = vld [vmem:[%s168] sm:$0xff]
        %s340 = scalar_lea.vmem %s1, 16
        %v341 = vld [vmem:[%s340] sm:$0xff]
        %v343 = vcombine.high %v339, %v339
        %344 = vrot.lane.b32.xlu0 %v339, 126
        %v345 = vpop.permute.xlu0 %344
        %346 = vrot.lane.b32.xlu0 %v343, 126
        %v347 = vpop.permute.xlu0 %346
        %vm348 = vcmask 1031168
        %v349 = vsel %vm348, %v345, %v347
        %v351 = vsel %vm181, %v341, 0
        %v353 = vsel %vm185, %v349, 0
        %v355 = vsel %vm185, %v347, 0
        %357 = vmatprep.subr.mxu0 %v355
        %358 = vmatpush1.msra.mxu0 %v353
        %359 = vmatprep.subr.mxu0 0.0
        %360 = vmatpush1.msra.mxu0 0.0
        %361 = vmatprep.subr.mxu0 0.0
        %362 = vmatpush1.msra.mxu0 0.0
        %363 = vmatprep.subr.mxu0 0.0
        %364 = vmatpush1.msra.mxu0 0.0
        %365 = vmatprep.subr.mxu0 0.0
        %366 = vmatpush1.msra.mxu0 0.0
        %367 = vmatprep.subr.mxu0 0.0
        %368 = vmatpush1.msra.mxu0 0.0
        %369 = vmatprep.subr.mxu0 0.0
        %370 = vmatpush1.msra.mxu0 0.0
        %371 = vmatprep.subr.mxu0 0.0
        %372 = vmatpush1.msra.mxu0 0.0
        %373 = vmatprep.subr.mxu0 0.0
        %374 = vmatpush1.msra.mxu0 0.0
        %375 = vmatprep.subr.mxu0 0.0
        %376 = vmatpush1.msra.mxu0 0.0
        %377 = vmatprep.subr.mxu0 0.0
        %378 = vmatpush1.msra.mxu0 0.0
        %379 = vmatprep.subr.mxu0 0.0
        %380 = vmatpush1.msra.mxu0 0.0
        %381 = vmatprep.subr.mxu0 0.0
        %382 = vmatpush1.msra.mxu0 0.0
        %383 = vmatprep.subr.mxu0 0.0
        %384 = vmatpush1.msra.mxu0 0.0
        %385 = vmatprep.subr.mxu0 0.0
        %386 = vmatpush1.msra.mxu0 0.0
        %387 = vmatprep.subr.mxu0 0.0
        %388 = vmatpush1.msra.mxu0 0.0
        %389 = vmatprep.subr.mxu0 0.0
        %390 = vmatpush1.msra.mxu0 0.0
        %391 = vmatprep.subr.mxu0 0.0
        %392 = vmatpush1.msra.mxu0 0.0
        %393 = vmatprep.subr.mxu0 0.0
        %394 = vmatpush1.msra.mxu0 0.0
        %395 = vmatprep.subr.mxu0 0.0
        %396 = vmatpush1.msra.mxu0 0.0
        %397 = vmatprep.subr.mxu0 0.0
        %398 = vmatpush1.msra.mxu0 0.0
        %399 = vmatprep.subr.mxu0 0.0
        %400 = vmatpush1.msra.mxu0 0.0
        %401 = vmatprep.subr.mxu0 0.0
        %402 = vmatpush1.msra.mxu0 0.0
        %403 = vmatprep.subr.mxu0 0.0
        %404 = vmatpush1.msra.mxu0 0.0
        %405 = vmatprep.subr.mxu0 0.0
        %406 = vmatpush1.msra.mxu0 0.0
        %407 = vmatprep.subr.mxu0 0.0
        %408 = vmatpush1.msra.mxu0 0.0
        %409 = vmatprep.subr.mxu0 0.0
        %410 = vmatpush1.msra.mxu0 0.0
        %411 = vmatprep.subr.mxu0 0.0
        %412 = vmatpush1.msra.mxu0 0.0
        %413 = vmatprep.subr.mxu0 0.0
        %414 = vmatpush1.msra.mxu0 0.0
        %415 = vmatprep.subr.mxu0 0.0
        %416 = vmatpush1.msra.mxu0 0.0
        %417 = vmatprep.subr.mxu0 0.0
        %418 = vmatpush1.msra.mxu0 0.0
        %419 = vmatprep.subr.mxu0 0.0
        %420 = vmatpush1.msra.mxu0 0.0
        %421 = vmatprep.mubr.f32.mxu0 0.0
        %422 = vmatmul.mubr.f32.gmra.mrb[0].mxu0 %v351
        %v423 = vpop.f32.mrb[0].mxu0
        %v424 = vadd.f32 0.0, %v423
        %v425 = vpop.f32.mrb[0].mxu0
        %v426 = vadd.f32 0.0, %v425
        %427 = vdwg.mxu0
        %v428 = vadd.f32 %v335, %v424
        %v429 = vadd.f32 %v337, %v426
        %v430 = vld [vmem:[%s168] sm:$0xff]
        %s431 = scalar_lea.vmem %s1, 24
        %v432 = vld [vmem:[%s431] sm:$0xff]
        %v434 = vcombine.high %v430, %v430
        %435 = vrot.lane.b32.xlu0 %v430, 112
        %v436 = vpop.permute.xlu0 %435
        %437 = vrot.lane.b32.xlu0 %v434, 112
        %v438 = vpop.permute.xlu0 %437
        %vm439 = vcmask 916480
        %v440 = vsel %vm439, %v436, %v438
        %v442 = vsel %vm181, %v432, 0
        %v444 = vsel %vm185, %v440, 0
        %v446 = vsel %vm185, %v438, 0
        %448 = vmatprep.subr.mxu0 %v446
        %449 = vmatpush1.msra.mxu0 %v444
        %450 = vmatprep.subr.mxu0 0.0
        %451 = vmatpush1.msra.mxu0 0.0
        %452 = vmatprep.subr.mxu0 0.0
        %453 = vmatpush1.msra.mxu0 0.0
        %454 = vmatprep.subr.mxu0 0.0
        %455 = vmatpush1.msra.mxu0 0.0
        %456 = vmatprep.subr.mxu0 0.0
        %457 = vmatpush1.msra.mxu0 0.0
        %458 = vmatprep.subr.mxu0 0.0
        %459 = vmatpush1.msra.mxu0 0.0
        %460 = vmatprep.subr.mxu0 0.0
        %461 = vmatpush1.msra.mxu0 0.0
        %462 = vmatprep.subr.mxu0 0.0
        %463 = vmatpush1.msra.mxu0 0.0
        %464 = vmatprep.subr.mxu0 0.0
        %465 = vmatpush1.msra.mxu0 0.0
        %466 = vmatprep.subr.mxu0 0.0
        %467 = vmatpush1.msra.mxu0 0.0
        %468 = vmatprep.subr.mxu0 0.0
        %469 = vmatpush1.msra.mxu0 0.0
        %470 = vmatprep.subr.mxu0 0.0
        %471 = vmatpush1.msra.mxu0 0.0
        %472 = vmatprep.subr.mxu0 0.0
        %473 = vmatpush1.msra.mxu0 0.0
        %474 = vmatprep.subr.mxu0 0.0
        %475 = vmatpush1.msra.mxu0 0.0
        %476 = vmatprep.subr.mxu0 0.0
        %477 = vmatpush1.msra.mxu0 0.0
        %478 = vmatprep.subr.mxu0 0.0
        %479 = vmatpush1.msra.mxu0 0.0
        %480 = vmatprep.subr.mxu0 0.0
        %481 = vmatpush1.msra.mxu0 0.0
        %482 = vmatprep.subr.mxu0 0.0
        %483 = vmatpush1.msra.mxu0 0.0
        %484 = vmatprep.subr.mxu0 0.0
        %485 = vmatpush1.msra.mxu0 0.0
        %486 = vmatprep.subr.mxu0 0.0
        %487 = vmatpush1.msra.mxu0 0.0
        %488 = vmatprep.subr.mxu0 0.0
        %489 = vmatpush1.msra.mxu0 0.0
        %490 = vmatprep.subr.mxu0 0.0
        %491 = vmatpush1.msra.mxu0 0.0
        %492 = vmatprep.subr.mxu0 0.0
        %493 = vmatpush1.msra.mxu0 0.0
        %494 = vmatprep.subr.mxu0 0.0
        %495 = vmatpush1.msra.mxu0 0.0
        %496 = vmatprep.subr.mxu0 0.0
        %497 = vmatpush1.msra.mxu0 0.0
        %498 = vmatprep.subr.mxu0 0.0
        %499 = vmatpush1.msra.mxu0 0.0
        %500 = vmatprep.subr.mxu0 0.0
        %501 = vmatpush1.msra.mxu0 0.0
        %502 = vmatprep.subr.mxu0 0.0
        %503 = vmatpush1.msra.mxu0 0.0
        %504 = vmatprep.subr.mxu0 0.0
        %505 = vmatpush1.msra.mxu0 0.0
        %506 = vmatprep.subr.mxu0 0.0
        %507 = vmatpush1.msra.mxu0 0.0
        %508 = vmatprep.subr.mxu0 0.0
        %509 = vmatpush1.msra.mxu0 0.0
        %510 = vmatprep.subr.mxu0 0.0
        %511 = vmatpush1.msra.mxu0 0.0
        %512 = vmatprep.mubr.f32.mxu0 0.0
        %513 = vmatmul.mubr.f32.gmra.mrb[0].mxu0 %v442
        %v514 = vpop.f32.mrb[0].mxu0
        %v515 = vadd.f32 0.0, %v514
        %v516 = vpop.f32.mrb[0].mxu0
        %v517 = vadd.f32 0.0, %v516
        %518 = vdwg.mxu0
        %v519 = vadd.f32 %v428, %v515
        %v520 = vadd.f32 %v429, %v517
        %v521 = vld [vmem:[%s168] sm:$0xff]
        %s522 = scalar_lea.vmem %s1, 32
        %v523 = vld [vmem:[%s522] sm:$0xff]
        %v525 = vcombine.high %v521, %v521
        %526 = vrot.lane.b32.xlu0 %v521, 111
        %v527 = vpop.permute.xlu0 %526
        %528 = vrot.lane.b32.xlu0 %v525, 111
        %v529 = vpop.permute.xlu0 %528
        %vm530 = vcmask 908288
        %v531 = vsel %vm530, %v527, %v529
        %v533 = vsel %vm181, %v523, 0
        %v535 = vsel %vm185, %v531, 0
        %v537 = vsel %vm185, %v529, 0
        %539 = vmatprep.subr.mxu0 %v537
        %540 = vmatpush1.msra.mxu0 %v535
        %541 = vmatprep.subr.mxu0 0.0
        %542 = vmatpush1.msra.mxu0 0.0
        %543 = vmatprep.subr.mxu0 0.0
        %544 = vmatpush1.msra.mxu0 0.0
        %545 = vmatprep.subr.mxu0 0.0
        %546 = vmatpush1.msra.mxu0 0.0
        %547 = vmatprep.subr.mxu0 0.0
        %548 = vmatpush1.msra.mxu0 0.0
        %549 = vmatprep.subr.mxu0 0.0
        %550 = vmatpush1.msra.mxu0 0.0
        %551 = vmatprep.subr.mxu0 0.0
        %552 = vmatpush1.msra.mxu0 0.0
        %553 = vmatprep.subr.mxu0 0.0
        %554 = vmatpush1.msra.mxu0 0.0
        %555 = vmatprep.subr.mxu0 0.0
        %556 = vmatpush1.msra.mxu0 0.0
        %557 = vmatprep.subr.mxu0 0.0
        %558 = vmatpush1.msra.mxu0 0.0
        %559 = vmatprep.subr.mxu0 0.0
        %560 = vmatpush1.msra.mxu0 0.0
        %561 = vmatprep.subr.mxu0 0.0
        %562 = vmatpush1.msra.mxu0 0.0
        %563 = vmatprep.subr.mxu0 0.0
        %564 = vmatpush1.msra.mxu0 0.0
        %565 = vmatprep.subr.mxu0 0.0
        %566 = vmatpush1.msra.mxu0 0.0
        %567 = vmatprep.subr.mxu0 0.0
        %568 = vmatpush1.msra.mxu0 0.0
        %569 = vmatprep.subr.mxu0 0.0
        %570 = vmatpush1.msra.mxu0 0.0
        %571 = vmatprep.subr.mxu0 0.0
        %572 = vmatpush1.msra.mxu0 0.0
        %573 = vmatprep.subr.mxu0 0.0
        %574 = vmatpush1.msra.mxu0 0.0
        %575 = vmatprep.subr.mxu0 0.0
        %576 = vmatpush1.msra.mxu0 0.0
        %577 = vmatprep.subr.mxu0 0.0
        %578 = vmatpush1.msra.mxu0 0.0
        %579 = vmatprep.subr.mxu0 0.0
        %580 = vmatpush1.msra.mxu0 0.0
        %581 = vmatprep.subr.mxu0 0.0
        %582 = vmatpush1.msra.mxu0 0.0
        %583 = vmatprep.subr.mxu0 0.0
        %584 = vmatpush1.msra.mxu0 0.0
        %585 = vmatprep.subr.mxu0 0.0
        %586 = vmatpush1.msra.mxu0 0.0
        %587 = vmatprep.subr.mxu0 0.0
        %588 = vmatpush1.msra.mxu0 0.0
        %589 = vmatprep.subr.mxu0 0.0
        %590 = vmatpush1.msra.mxu0 0.0
        %591 = vmatprep.subr.mxu0 0.0
        %592 = vmatpush1.msra.mxu0 0.0
        %593 = vmatprep.subr.mxu0 0.0
        %594 = vmatpush1.msra.mxu0 0.0
        %595 = vmatprep.subr.mxu0 0.0
        %596 = vmatpush1.msra.mxu0 0.0
        %597 = vmatprep.subr.mxu0 0.0
        %598 = vmatpush1.msra.mxu0 0.0
        %599 = vmatprep.subr.mxu0 0.0
        %600 = vmatpush1.msra.mxu0 0.0
        %601 = vmatprep.subr.mxu0 0.0
        %602 = vmatpush1.msra.mxu0 0.0
        %603 = vmatprep.mubr.f32.mxu0 0.0
        %604 = vmatmul.mubr.f32.gmra.mrb[0].mxu0 %v533
        %v605 = vpop.f32.mrb[0].mxu0
        %v606 = vadd.f32 0.0, %v605
        %v607 = vpop.f32.mrb[0].mxu0
        %v608 = vadd.f32 0.0, %v607
        %609 = vdwg.mxu0
        %v610 = vadd.f32 %v519, %v606
        %v611 = vadd.f32 %v520, %v608
        %v612 = vld [vmem:[%s168] sm:$0xff]
        %s613 = scalar_lea.vmem %s1, 40
        %v614 = vld [vmem:[%s613] sm:$0xff]
        %v616 = vcombine.high %v612, %v612
        %617 = vrot.lane.b32.xlu0 %v612, 110
        %v618 = vpop.permute.xlu0 %617
        %619 = vrot.lane.b32.xlu0 %v616, 110
        %v620 = vpop.permute.xlu0 %619
        %vm621 = vcmask 900096
        %v622 = vsel %vm621, %v618, %v620
        %v624 = vsel %vm181, %v614, 0
        %v626 = vsel %vm185, %v622, 0
        %v628 = vsel %vm185, %v620, 0
        %630 = vmatprep.subr.mxu0 %v628
        %631 = vmatpush1.msra.mxu0 %v626
        %632 = vmatprep.subr.mxu0 0.0
        %633 = vmatpush1.msra.mxu0 0.0
        %634 = vmatprep.subr.mxu0 0.0
        %635 = vmatpush1.msra.mxu0 0.0
        %636 = vmatprep.subr.mxu0 0.0
        %637 = vmatpush1.msra.mxu0 0.0
        %638 = vmatprep.subr.mxu0 0.0
        %639 = vmatpush1.msra.mxu0 0.0
        %640 = vmatprep.subr.mxu0 0.0
        %641 = vmatpush1.msra.mxu0 0.0
        %642 = vmatprep.subr.mxu0 0.0
        %643 = vmatpush1.msra.mxu0 0.0
        %644 = vmatprep.subr.mxu0 0.0
        %645 = vmatpush1.msra.mxu0 0.0
        %646 = vmatprep.subr.mxu0 0.0
        %647 = vmatpush1.msra.mxu0 0.0
        %648 = vmatprep.subr.mxu0 0.0
        %649 = vmatpush1.msra.mxu0 0.0
        %650 = vmatprep.subr.mxu0 0.0
        %651 = vmatpush1.msra.mxu0 0.0
        %652 = vmatprep.subr.mxu0 0.0
        %653 = vmatpush1.msra.mxu0 0.0
        %654 = vmatprep.subr.mxu0 0.0
        %655 = vmatpush1.msra.mxu0 0.0
        %656 = vmatprep.subr.mxu0 0.0
        %657 = vmatpush1.msra.mxu0 0.0
        %658 = vmatprep.subr.mxu0 0.0
        %659 = vmatpush1.msra.mxu0 0.0
        %660 = vmatprep.subr.mxu0 0.0
        %661 = vmatpush1.msra.mxu0 0.0
        %662 = vmatprep.subr.mxu0 0.0
        %663 = vmatpush1.msra.mxu0 0.0
        %664 = vmatprep.subr.mxu0 0.0
        %665 = vmatpush1.msra.mxu0 0.0
        %666 = vmatprep.subr.mxu0 0.0
        %667 = vmatpush1.msra.mxu0 0.0
        %668 = vmatprep.subr.mxu0 0.0
        %669 = vmatpush1.msra.mxu0 0.0
        %670 = vmatprep.subr.mxu0 0.0
        %671 = vmatpush1.msra.mxu0 0.0
        %672 = vmatprep.subr.mxu0 0.0
        %673 = vmatpush1.msra.mxu0 0.0
        %674 = vmatprep.subr.mxu0 0.0
        %675 = vmatpush1.msra.mxu0 0.0
        %676 = vmatprep.subr.mxu0 0.0
        %677 = vmatpush1.msra.mxu0 0.0
        %678 = vmatprep.subr.mxu0 0.0
        %679 = vmatpush1.msra.mxu0 0.0
        %680 = vmatprep.subr.mxu0 0.0
        %681 = vmatpush1.msra.mxu0 0.0
        %682 = vmatprep.subr.mxu0 0.0
        %683 = vmatpush1.msra.mxu0 0.0
        %684 = vmatprep.subr.mxu0 0.0
        %685 = vmatpush1.msra.mxu0 0.0
        %686 = vmatprep.subr.mxu0 0.0
        %687 = vmatpush1.msra.mxu0 0.0
        %688 = vmatprep.subr.mxu0 0.0
        %689 = vmatpush1.msra.mxu0 0.0
        %690 = vmatprep.subr.mxu0 0.0
        %691 = vmatpush1.msra.mxu0 0.0
        %692 = vmatprep.subr.mxu0 0.0
        %693 = vmatpush1.msra.mxu0 0.0
        %694 = vmatprep.mubr.f32.mxu0 0.0
        %695 = vmatmul.mubr.f32.gmra.mrb[0].mxu0 %v624
        %v696 = vpop.f32.mrb[0].mxu0
        %v697 = vadd.f32 0.0, %v696
        %v698 = vpop.f32.mrb[0].mxu0
        %v699 = vadd.f32 0.0, %v698
        %700 = vdwg.mxu0
        %v701 = vadd.f32 %v610, %v697
        %v702 = vadd.f32 %v611, %v699
        %v703 = vld [vmem:[%s168] sm:$0xff]
        %s704 = scalar_lea.vmem %s1, 48
        %v705 = vld [vmem:[%s704] sm:$0xff]
        %v707 = vcombine.high %v703, %v703
        %708 = vrot.lane.b32.xlu0 %v703, 96
        %v709 = vpop.permute.xlu0 %708
        %710 = vrot.lane.b32.xlu0 %v707, 96
        %v711 = vpop.permute.xlu0 %710
        %vm712 = vcmask 785408
        %v713 = vsel %vm712, %v709, %v711
        %v715 = vsel %vm181, %v705, 0
        %v717 = vsel %vm185, %v713, 0
        %v719 = vsel %vm185, %v711, 0
        %721 = vmatprep.subr.mxu0 %v719
        %722 = vmatpush1.msra.mxu0 %v717
        %723 = vmatprep.subr.mxu0 0.0
        %724 = vmatpush1.msra.mxu0 0.0
        %725 = vmatprep.subr.mxu0 0.0
        %726 = vmatpush1.msra.mxu0 0.0
        %727 = vmatprep.subr.mxu0 0.0
        %728 = vmatpush1.msra.mxu0 0.0
        %729 = vmatprep.subr.mxu0 0.0
        %730 = vmatpush1.msra.mxu0 0.0
        %731 = vmatprep.subr.mxu0 0.0
        %732 = vmatpush1.msra.mxu0 0.0
        %733 = vmatprep.subr.mxu0 0.0
        %734 = vmatpush1.msra.mxu0 0.0
        %735 = vmatprep.subr.mxu0 0.0
        %736 = vmatpush1.msra.mxu0 0.0
        %737 = vmatprep.subr.mxu0 0.0
        %738 = vmatpush1.msra.mxu0 0.0
        %739 = vmatprep.subr.mxu0 0.0
        %740 = vmatpush1.msra.mxu0 0.0
        %741 = vmatprep.subr.mxu0 0.0
        %742 = vmatpush1.msra.mxu0 0.0
        %743 = vmatprep.subr.mxu0 0.0
        %744 = vmatpush1.msra.mxu0 0.0
        %745 = vmatprep.subr.mxu0 0.0
        %746 = vmatpush1.msra.mxu0 0.0
        %747 = vmatprep.subr.mxu0 0.0
        %748 = vmatpush1.msra.mxu0 0.0
        %749 = vmatprep.subr.mxu0 0.0
        %750 = vmatpush1.msra.mxu0 0.0
        %751 = vmatprep.subr.mxu0 0.0
        %752 = vmatpush1.msra.mxu0 0.0
        %753 = vmatprep.subr.mxu0 0.0
        %754 = vmatpush1.msra.mxu0 0.0
        %755 = vmatprep.subr.mxu0 0.0
        %756 = vmatpush1.msra.mxu0 0.0
        %757 = vmatprep.subr.mxu0 0.0
        %758 = vmatpush1.msra.mxu0 0.0
        %759 = vmatprep.subr.mxu0 0.0
        %760 = vmatpush1.msra.mxu0 0.0
        %761 = vmatprep.subr.mxu0 0.0
        %762 = vmatpush1.msra.mxu0 0.0
        %763 = vmatprep.subr.mxu0 0.0
        %764 = vmatpush1.msra.mxu0 0.0
        %765 = vmatprep.subr.mxu0 0.0
        %766 = vmatpush1.msra.mxu0 0.0
        %767 = vmatprep.subr.mxu0 0.0
        %768 = vmatpush1.msra.mxu0 0.0
        %769 = vmatprep.subr.mxu0 0.0
        %770 = vmatpush1.msra.mxu0 0.0
        %771 = vmatprep.subr.mxu0 0.0
        %772 = vmatpush1.msra.mxu0 0.0
        %773 = vmatprep.subr.mxu0 0.0
        %774 = vmatpush1.msra.mxu0 0.0
        %775 = vmatprep.subr.mxu0 0.0
        %776 = vmatpush1.msra.mxu0 0.0
        %777 = vmatprep.subr.mxu0 0.0
        %778 = vmatpush1.msra.mxu0 0.0
        %779 = vmatprep.subr.mxu0 0.0
        %780 = vmatpush1.msra.mxu0 0.0
        %781 = vmatprep.subr.mxu0 0.0
        %782 = vmatpush1.msra.mxu0 0.0
        %783 = vmatprep.subr.mxu0 0.0
        %784 = vmatpush1.msra.mxu0 0.0
        %785 = vmatprep.mubr.f32.mxu0 0.0
        %786 = vmatmul.mubr.f32.gmra.mrb[0].mxu0 %v715
        %v787 = vpop.f32.mrb[0].mxu0
        %v788 = vadd.f32 0.0, %v787
        %v789 = vpop.f32.mrb[0].mxu0
        %v790 = vadd.f32 0.0, %v789
        %791 = vdwg.mxu0
        %v792 = vadd.f32 %v701, %v788
        %v793 = vadd.f32 %v702, %v790
        %v794 = vld [vmem:[%s168] sm:$0xff]
        %s795 = scalar_lea.vmem %s1, 56
        %v796 = vld [vmem:[%s795] sm:$0xff]
        %v798 = vcombine.high %v794, %v794
        %799 = vrot.lane.b32.xlu0 %v794, 95
        %v800 = vpop.permute.xlu0 %799
        %801 = vrot.lane.b32.xlu0 %v798, 95
        %v802 = vpop.permute.xlu0 %801
        %vm803 = vcmask 777216
        %v804 = vsel %vm803, %v800, %v802
        %v806 = vsel %vm181, %v796, 0
        %v808 = vsel %vm185, %v804, 0
        %v810 = vsel %vm185, %v802, 0
        %812 = vmatprep.subr.mxu0 %v810
        %813 = vmatpush1.msra.mxu0 %v808
        %814 = vmatprep.subr.mxu0 0.0
        %815 = vmatpush1.msra.mxu0 0.0
        %816 = vmatprep.subr.mxu0 0.0
        %817 = vmatpush1.msra.mxu0 0.0
        %818 = vmatprep.subr.mxu0 0.0
        %819 = vmatpush1.msra.mxu0 0.0
        %820 = vmatprep.subr.mxu0 0.0
        %821 = vmatpush1.msra.mxu0 0.0
        %822 = vmatprep.subr.mxu0 0.0
        %823 = vmatpush1.msra.mxu0 0.0
        %824 = vmatprep.subr.mxu0 0.0
        %825 = vmatpush1.msra.mxu0 0.0
        %826 = vmatprep.subr.mxu0 0.0
        %827 = vmatpush1.msra.mxu0 0.0
        %828 = vmatprep.subr.mxu0 0.0
        %829 = vmatpush1.msra.mxu0 0.0
        %830 = vmatprep.subr.mxu0 0.0
        %831 = vmatpush1.msra.mxu0 0.0
        %832 = vmatprep.subr.mxu0 0.0
        %833 = vmatpush1.msra.mxu0 0.0
        %834 = vmatprep.subr.mxu0 0.0
        %835 = vmatpush1.msra.mxu0 0.0
        %836 = vmatprep.subr.mxu0 0.0
        %837 = vmatpush1.msra.mxu0 0.0
        %838 = vmatprep.subr.mxu0 0.0
        %839 = vmatpush1.msra.mxu0 0.0
        %840 = vmatprep.subr.mxu0 0.0
        %841 = vmatpush1.msra.mxu0 0.0
        %842 = vmatprep.subr.mxu0 0.0
        %843 = vmatpush1.msra.mxu0 0.0
        %844 = vmatprep.subr.mxu0 0.0
        %845 = vmatpush1.msra.mxu0 0.0
        %846 = vmatprep.subr.mxu0 0.0
        %847 = vmatpush1.msra.mxu0 0.0
        %848 = vmatprep.subr.mxu0 0.0
        %849 = vmatpush1.msra.mxu0 0.0
        %850 = vmatprep.subr.mxu0 0.0
        %851 = vmatpush1.msra.mxu0 0.0
        %852 = vmatprep.subr.mxu0 0.0
        %853 = vmatpush1.msra.mxu0 0.0
        %854 = vmatprep.subr.mxu0 0.0
        %855 = vmatpush1.msra.mxu0 0.0
        %856 = vmatprep.subr.mxu0 0.0
        %857 = vmatpush1.msra.mxu0 0.0
        %858 = vmatprep.subr.mxu0 0.0
        %859 = vmatpush1.msra.mxu0 0.0
        %860 = vmatprep.subr.mxu0 0.0
        %861 = vmatpush1.msra.mxu0 0.0
        %862 = vmatprep.subr.mxu0 0.0
        %863 = vmatpush1.msra.mxu0 0.0
        %864 = vmatprep.subr.mxu0 0.0
        %865 = vmatpush1.msra.mxu0 0.0
        %866 = vmatprep.subr.mxu0 0.0
        %867 = vmatpush1.msra.mxu0 0.0
        %868 = vmatprep.subr.mxu0 0.0
        %869 = vmatpush1.msra.mxu0 0.0
        %870 = vmatprep.subr.mxu0 0.0
        %871 = vmatpush1.msra.mxu0 0.0
        %872 = vmatprep.subr.mxu0 0.0
        %873 = vmatpush1.msra.mxu0 0.0
        %874 = vmatprep.subr.mxu0 0.0
        %875 = vmatpush1.msra.mxu0 0.0
        %876 = vmatprep.mubr.f32.mxu0 0.0
        %877 = vmatmul.mubr.f32.gmra.mrb[0].mxu0 %v806
        %v878 = vpop.f32.mrb[0].mxu0
        %v879 = vadd.f32 0.0, %v878
        %v880 = vpop.f32.mrb[0].mxu0
        %v881 = vadd.f32 0.0, %v880
        %882 = vdwg.mxu0
        %v883 = vadd.f32 %v792, %v879
        %v884 = vadd.f32 %v793, %v881
        %v885 = vld [vmem:[%s168] sm:$0xff]
        %s886 = scalar_lea.vmem %s1, 64
        %v887 = vld [vmem:[%s886] sm:$0xff]
        %v889 = vcombine.high %v885, %v885
        %890 = vrot.lane.b32.xlu0 %v885, 94
        %v891 = vpop.permute.xlu0 %890
        %892 = vrot.lane.b32.xlu0 %v889, 94
        %v893 = vpop.permute.xlu0 %892
        %vm894 = vcmask 769024
        %v895 = vsel %vm894, %v891, %v893
        %v897 = vsel %vm181, %v887, 0
        %v899 = vsel %vm185, %v895, 0
        %v901 = vsel %vm185, %v893, 0
        %903 = vmatprep.subr.mxu0 %v901
        %904 = vmatpush1.msra.mxu0 %v899
        %905 = vmatprep.subr.mxu0 0.0
        %906 = vmatpush1.msra.mxu0 0.0
        %907 = vmatprep.subr.mxu0 0.0
        %908 = vmatpush1.msra.mxu0 0.0
        %909 = vmatprep.subr.mxu0 0.0
        %910 = vmatpush1.msra.mxu0 0.0
        %911 = vmatprep.subr.mxu0 0.0
        %912 = vmatpush1.msra.mxu0 0.0
        %913 = vmatprep.subr.mxu0 0.0
        %914 = vmatpush1.msra.mxu0 0.0
        %915 = vmatprep.subr.mxu0 0.0
        %916 = vmatpush1.msra.mxu0 0.0
        %917 = vmatprep.subr.mxu0 0.0
        %918 = vmatpush1.msra.mxu0 0.0
        %919 = vmatprep.subr.mxu0 0.0
        %920 = vmatpush1.msra.mxu0 0.0
        %921 = vmatprep.subr.mxu0 0.0
        %922 = vmatpush1.msra.mxu0 0.0
        %923 = vmatprep.subr.mxu0 0.0
        %924 = vmatpush1.msra.mxu0 0.0
        %925 = vmatprep.subr.mxu0 0.0
        %926 = vmatpush1.msra.mxu0 0.0
        %927 = vmatprep.subr.mxu0 0.0
        %928 = vmatpush1.msra.mxu0 0.0
        %929 = vmatprep.subr.mxu0 0.0
        %930 = vmatpush1.msra.mxu0 0.0
        %931 = vmatprep.subr.mxu0 0.0
        %932 = vmatpush1.msra.mxu0 0.0
        %933 = vmatprep.subr.mxu0 0.0
        %934 = vmatpush1.msra.mxu0 0.0
        %935 = vmatprep.subr.mxu0 0.0
        %936 = vmatpush1.msra.mxu0 0.0
        %937 = vmatprep.subr.mxu0 0.0
        %938 = vmatpush1.msra.mxu0 0.0
        %939 = vmatprep.subr.mxu0 0.0
        %940 = vmatpush1.msra.mxu0 0.0
        %941 = vmatprep.subr.mxu0 0.0
        %942 = vmatpush1.msra.mxu0 0.0
        %943 = vmatprep.subr.mxu0 0.0
        %944 = vmatpush1.msra.mxu0 0.0
        %945 = vmatprep.subr.mxu0 0.0
        %946 = vmatpush1.msra.mxu0 0.0
        %947 = vmatprep.subr.mxu0 0.0
        %948 = vmatpush1.msra.mxu0 0.0
        %949 = vmatprep.subr.mxu0 0.0
        %950 = vmatpush1.msra.mxu0 0.0
        %951 = vmatprep.subr.mxu0 0.0
        %952 = vmatpush1.msra.mxu0 0.0
        %953 = vmatprep.subr.mxu0 0.0
        %954 = vmatpush1.msra.mxu0 0.0
        %955 = vmatprep.subr.mxu0 0.0
        %956 = vmatpush1.msra.mxu0 0.0
        %957 = vmatprep.subr.mxu0 0.0
        %958 = vmatpush1.msra.mxu0 0.0
        %959 = vmatprep.subr.mxu0 0.0
        %960 = vmatpush1.msra.mxu0 0.0
        %961 = vmatprep.subr.mxu0 0.0
        %962 = vmatpush1.msra.mxu0 0.0
        %963 = vmatprep.subr.mxu0 0.0
        %964 = vmatpush1.msra.mxu0 0.0
        %965 = vmatprep.subr.mxu0 0.0
        %966 = vmatpush1.msra.mxu0 0.0
        %967 = vmatprep.mubr.f32.mxu0 0.0
        %968 = vmatmul.mubr.f32.gmra.mrb[0].mxu0 %v897
        %v969 = vpop.f32.mrb[0].mxu0
        %v970 = vadd.f32 0.0, %v969
        %v971 = vpop.f32.mrb[0].mxu0
        %v972 = vadd.f32 0.0, %v971
        %973 = vdwg.mxu0
        %v974 = vadd.f32 %v883, %v970
        %v975 = vadd.f32 %v884, %v972
        %v976 = vld [vmem:[%s2] sm:$0xff]
        %978 = vset.pattern.permute.xlu0 0
        %979 = vperm.xlu0 %978, %v976
        %v980 = vpop.permute.xlu0 %979
        %v982 = vadd.f32 %v974, %v980
        %v983 = vadd.f32 %v975, %v980
        %984 = vst [vmem:[%s163] sm:$0xff] %v982
        %985 = vst.msk [vmem:[%s163 + $0x8] sm:$0xff] %vm894, %v983
        %s986 = sand.u32 %s93, 1
        %s987 = scalar_lea.sflag [#allocation3], %s986
        %s988 = sand.u32 %s93, 1
        %s989 = smul.addr %s988, 16
        %s990 = scalar_lea.vmem [#allocation2], %s989
        // Predicated region
        $region33: #{tpu_custom_call.1} parent=31 // pred_check
          %p991 = pneg %p103
        $region34: #{tpu_custom_call.1} parent=31 // pred_check_branch
          %993 = sbr.rel (%p991) target = $region36
        $region35: #{tpu_custom_call.1} parent=31 // pred_region
          %s995 = ssub.s32 256, 256
          %996 = vsyncadd %s987, %s995
          %s997 = smul.addr %s17, 2
          %s998 = smul.addr %s997, 128
          %s999 = scalar_lea.hbm %s3, %s998
          %s1001 = sshll.u32 %s990, 4
          %s1002 = int_to_ptr.vmem [resolvable:$true] %s1001
          %1004 = dma.vmem_to_hbm [thread:$0]  %s1002, 256, %s999, %s987
        $region36: #{tpu_custom_call.1} parent=31 // pred_fallthru
          _
      $region32: #{tpu_custom_call.1} parent=5 // pred_fallthru
        _
      %p1005 = scmp.le.s32.totalorder 2, %s12
      // Predicated region
      $region37: #{tpu_custom_call.1} parent=5 // pred_check
        %p1006 = pneg %p1005
      $region38: #{tpu_custom_call.1} parent=5 // pred_check_branch
        %1008 = sbr.rel (%p1006) target = $region40
      $region39: #{tpu_custom_call.1} parent=5 // pred_region
        %s1009 = ssub.s32 %s12, 2
        // Predicated region
        $region41: #{tpu_custom_call.1} parent=39 // pred_check
          %p1010 = pneg %p109
        $region42: #{tpu_custom_call.1} parent=39 // pred_check_branch
          %1012 = sbr.rel (%p1010) target = $region44
        $region43: #{tpu_custom_call.1} parent=39 // pred_region
          %s1013 = sand.u32 %s94, 1
          %s1014 = scalar_lea.sflag [#allocation3], %s1013
          %s1015 = sand.u32 %s94, 1
          %s1016 = smul.addr %s1015, 16
          %s1017 = scalar_lea.vmem [#allocation2], %s1016
          %1018 = dma.done %s1014, 256
        $region44: #{tpu_custom_call.1} parent=39 // pred_fallthru
          _
      $region40: #{tpu_custom_call.1} parent=5 // pred_fallthru
        _
    $region6: #{tpu_custom_call.1} parent=1 // loop_footer
      %s16 = sadd.s32 1, %s12
    $region7: #{tpu_custom_call.1} parent=1 // loop_footer_branch
      %11 = sbr.rel target = $region3
    $region8: #{tpu_custom_call.1} parent=1 // loop_exit
      _
    %1019 = vsyncpa [#allocation3], 1
    %s1020 = scalar_lea.sflag [#allocation3], 1
    %1021 = vsyncpa %s1020, 1

</llo_original>
